<compile_context>
chip_gen: v6e
topology: v6e:2x2x1
jax: 0.10.0
libtpu: 0.0.40
codegen_flags: <defaults>
</compile_context>

<pallas_src>
import functools

import jax
import jax.numpy as jnp
import numpy as np
from jax.experimental import pallas as pl
from jax.experimental.pallas import tpu as pltpu


# ----------------------------------------------------------------------------
# Kernels
# ----------------------------------------------------------------------------
def _weight(pos_ref, b, t_off, j_local):
    """Position weight for global row j = j_local + t_off (all math exact).

    w = A + 0.025*j_local  if j_local < thr     (i.e. j <  pos1)
      = C - 0.025*j_local  otherwise            (i.e. j >= pos1)
    thr/A/C are per-tile scalars computed on the scalar unit from SMEM.
    """
    p0 = pos_ref[b, 0]
    p1 = pos_ref[b, 1]
    thr = (p1 - t_off).astype(jnp.float32)                    # exact integer
    a = 1.0 - 0.025 * thr
    c = 1.0 + 0.025 * (p0 - t_off).astype(jnp.float32)
    s = j_local * 0.025
    return jnp.where(j_local < thr, a + s, c - s)


def _apply(w, x_ref, o_ref, native_mul):
    if native_mul:
        # No per-element up/down casts; bf16 multiply on v6e/v7x (no-op for f32).
        o_ref[...] = (w.astype(x_ref.dtype) * x_ref[...]).astype(o_ref.dtype)
    else:
        o_ref[...] = (w * x_ref[...].astype(jnp.float32)).astype(o_ref.dtype)


def _ape_kernel_rows(pos_ref, x_ref, o_ref, *, native_mul):
    """Row-tiled path: block = (1, TS, H); per-row weight broadcast over lanes."""
    b = pl.program_id(0)
    t = pl.program_id(1)
    ts = x_ref.shape[1]
    j_local = jax.lax.broadcasted_iota(jnp.int32, (1, ts, 1), 1).astype(jnp.float32)
    w = _weight(pos_ref, b, t * ts, j_local)                  # (1, TS, 1)
    _apply(w, x_ref, o_ref, native_mul)


def _ape_kernel_folded(pos_ref, x_ref, lane_ref, o_ref, *, rows_per_super,
                       native_mul):
    """Lane-dense path: block = (1, TQ, 128); R = 128//H rows per super-row.

    lane_ref is the grid-invariant (1, 1, 128) f32 table of (lane // H).
    """
    b = pl.program_id(0)
    t = pl.program_id(1)
    ts = x_ref.shape[1]
    q = jax.lax.broadcasted_iota(jnp.int32, x_ref.shape, 1).astype(jnp.float32)
    j_local = q * float(rows_per_super) + lane_ref[...]       # local row index
    w = _weight(pos_ref, b, t * (ts * rows_per_super), j_local)
    _apply(w, x_ref, o_ref, native_mul)


# ----------------------------------------------------------------------------
# Wrapper
# ----------------------------------------------------------------------------
def _vmem_capacity_bytes():
    try:
        return int(pltpu.get_tpu_info().vmem_capacity_bytes)
    except Exception:
        return 128 * 1024 * 1024


def _has_native_bf16_vpu():
    try:
        kind = jax.devices()[0].device_kind.lower()
    except Exception:
        return False
    # v5e/v5p and earlier have no bf16 VALU; v6e/v7x do.
    return not any(tag in kind for tag in ("v2", "v3", "v4", "v5"))


def _choose_rows_per_block(num_rows, row_bytes, target_bytes, sublane):
    """Largest sublane-aligned row count with ~target_bytes per block buffer."""
    rows = int(max(1, target_bytes // max(int(row_bytes), 1)))
    if rows >= num_rows:
        return int(num_rows)
    rows = max(sublane, (rows // sublane) * sublane)
    return int(min(rows, num_rows))


def absolute_position_embedding(x, pos_inx):
    """x: (B, S, H), pos_inx: (B, 2) int -> (B, S, H) with x.dtype preserved."""
    B, S, H = x.shape
    pos_inx = pos_inx.astype(jnp.int32)
    dtype = x.dtype
    itemsize = dtype.itemsize

    if S >= (1 << 24):
        # TODO(synk): f32 row indices are exact only for S < 2^24; fall back
        # to an int32 index path if such sequence lengths are ever needed.
        raise NotImplementedError("sequence length >= 2^24 not supported")

    native_mul = (dtype == jnp.float32) or (
        dtype == jnp.bfloat16 and _has_native_bf16_vpu())

    # Lane-dense folding whenever H divides 128: pack R = 128//H rows into the
    # lane axis (pad S to a multiple of R) so stores are unmasked 128-lane vst.
    fold = (H < 128) and (128 % H == 0)
    if fold:
        rows_per_super = 128 // H
        s_pad = ((S + rows_per_super - 1) // rows_per_super) * rows_per_super
        x_in = x if s_pad == S else jnp.pad(x, ((0, 0), (0, s_pad - S), (0, 0)))
        num_rows = s_pad // rows_per_super
        width = 128
        x_in = x_in.reshape(B, num_rows, width)
    else:
        # H >= 128 (lane-aligned if a multiple of 128) or H does not divide 128
        # (masked-store fallback): one sequence row per sublane row.
        rows_per_super = 1
        s_pad = S
        num_rows = S
        width = H
        x_in = x

    # Generation-aware block sizing (amortize per-step overhead, stay in VMEM).
    vmem_cap = _vmem_capacity_bytes()
    if vmem_cap >= 96 * 1024 * 1024:        # v5e / v6e: 128 MiB physical VMEM
        target_bytes = 8 * 1024 * 1024
        vmem_limit = 48 * 1024 * 1024
    else:                                   # v7x: 64 MiB physical VMEM
        target_bytes = 4 * 1024 * 1024
        vmem_limit = 32 * 1024 * 1024

    sublane = max(8, 32 // itemsize)        # f32: 8, bf16: 16, int8/fp8: 32
    row_bytes = width * itemsize
    tile_rows = _choose_rows_per_block(num_rows, row_bytes, target_bytes, sublane)

    # Guarantee >= 2 grid steps on the parallel axes so both v7x TCs get work.
    if B * pl.cdiv(num_rows, tile_rows) < 2 and num_rows >= 2 * sublane:
        half = -(-num_rows // 2)
        tile_rows = ((half + sublane - 1) // sublane) * sublane
    grid = (B, pl.cdiv(num_rows, tile_rows))

    x_spec = pl.BlockSpec((1, tile_rows, width), lambda b, t, pos: (b, t, 0))
    out_spec = pl.BlockSpec((1, tile_rows, width), lambda b, t, pos: (b, t, 0))

    if fold:
        kernel = functools.partial(_ape_kernel_folded,
                                   rows_per_super=rows_per_super,
                                   native_mul=native_mul)
        # Grid-invariant lane term (lane // H): tiny resident input, fetched once.
        lane_base = (jnp.arange(128, dtype=jnp.int32) // H).astype(
            jnp.float32).reshape(1, 1, 128)
        in_specs = [x_spec,
                    pl.BlockSpec((1, 1, 128), lambda b, t, pos: (0, 0, 0))]
        operands = (pos_inx, x_in, lane_base)
    else:
        kernel = functools.partial(_ape_kernel_rows, native_mul=native_mul)
        in_specs = [x_spec]
        operands = (pos_inx, x_in)

    cost = pl.CostEstimate(
        flops=int(8 * B * num_rows * width),
        bytes_accessed=int(2 * B * num_rows * width * itemsize + 8 * B + 512),
        transcendentals=0)

    out = pl.pallas_call(
        kernel,
        out_shape=jax.ShapeDtypeStruct((B, num_rows, width), dtype),
        grid_spec=pltpu.PrefetchScalarGridSpec(
            num_scalar_prefetch=1,
            grid=grid,
            in_specs=in_specs,
            out_specs=out_spec,
        ),
        compiler_params=pltpu.CompilerParams(
            dimension_semantics=("parallel", "parallel"),
            vmem_limit_bytes=vmem_limit,
        ),
        cost_estimate=cost,
    )(*operands)

    out = out.reshape(B, s_pad, H)
    if s_pad != S:
        out = out[:, :S, :]
    return out


# ----------------------------------------------------------------------------
# Reference & tests
# ----------------------------------------------------------------------------
def _reference(x, pos_inx):
    """Pure-numpy re-implementation of the PyTorch weight_matrix + multiply."""
    x = np.asarray(x).astype(np.float32)
    pos_inx = np.asarray(pos_inx)
    B, S, _ = x.shape
    w = np.zeros((B, S), dtype=np.float32)
    for i in range(B):
        for j in range(pos_inx[i][1]):
            w[i, j] = 1 - (pos_inx[i][1] - j) / 40
        for j in range(pos_inx[i][1], S):
            w[i, j] = 1 - (j - pos_inx[i][0]) / 40
    return w[:, :, None] * x


if __name__ == "__main__":
    key = jax.random.PRNGKey(0)
    k1, k2, k3, k4, k5 = jax.random.split(key, 5)

    # Primary case (module-sized): H = 32 < 128 -> lane-dense folded path.
    x1 = jax.random.normal(k1, (2, 8, 32), dtype=jnp.float32)
    pos1 = jnp.array([[2, 5], [1, 4]], dtype=jnp.int32)
    o1 = jax.block_until_ready(absolute_position_embedding(x1, pos1))
    np.testing.assert_allclose(np.asarray(o1), _reference(x1, pos1),
                               rtol=1e-5, atol=1e-5)

    # Lane-aligned case: H multiple of 128 -> row-tiled path, per-row weight.
    x2 = jax.random.normal(k2, (2, 16, 128), dtype=jnp.float32)
    pos2 = jnp.array([[3, 7], [0, 10]], dtype=jnp.int32)
    o2 = jax.block_until_ready(absolute_position_embedding(x2, pos2))
    np.testing.assert_allclose(np.asarray(o2), _reference(x2, pos2),
                               rtol=1e-5, atol=1e-5)

    # bf16 activations: output dtype preserved (bf16 multiply on v6e/v7x).
    x3 = jax.random.normal(k3, (2, 8, 32), dtype=jnp.bfloat16)
    o3 = jax.block_until_ready(absolute_position_embedding(x3, pos1))
    assert o3.dtype == jnp.bfloat16
    np.testing.assert_allclose(np.asarray(o3).astype(np.float32),
                               _reference(x3, pos1),
                               rtol=5e-2, atol=5e-2)

    # Folded path with S not a multiple of 128//H -> pad + slice back.
    x4 = jax.random.normal(k4, (2, 7, 32), dtype=jnp.float32)
    o4 = jax.block_until_ready(absolute_position_embedding(x4, pos1))
    np.testing.assert_allclose(np.asarray(o4), _reference(x4, pos1),
                               rtol=1e-5, atol=1e-5)

    # H that does not divide 128 -> row-tiled fallback path.
    x5 = jax.random.normal(k5, (1, 10, 48), dtype=jnp.float32)
    pos5 = jnp.array([[2, 6]], dtype=jnp.int32)
    o5 = jax.block_until_ready(absolute_position_embedding(x5, pos5))
    np.testing.assert_allclose(np.asarray(o5), _reference(x5, pos5),
                               rtol=1e-5, atol=1e-5)

    print("KERNEL_OK")
</pallas_src>

<mosaic_0001>
module attributes {stable_mosaic.version = 11 : i64} {
  func.func @_ape_kernel_folded(%arg0: i32, %arg1: i32, %arg2: memref<2x2xi32, #tpu.memory_space<smem>>, %arg3: memref<1x2x128xf32, #tpu.memory_space<vmem>>, %arg4: memref<1x1x128xf32, #tpu.memory_space<vmem>>, %arg5: memref<1x2x128xf32, #tpu.memory_space<vmem>>) attributes {dimension_semantics = [#tpu.dimension_semantics<parallel>, #tpu.dimension_semantics<parallel>], iteration_bounds = array<i64: 2, 1>, scalar_prefetch = 1 : i64, scratch_operands = 0 : i64, tpu.core_type = #tpu.core_type<tc>, window_params = [{transform_indices = @transform_0, window_bounds = array<i64: 1, 2, 128>}, {pipeline_mode = #tpu.pipeline_mode<synchronous>, transform_indices = @transform_1, window_bounds = array<i64: 1, 1, 128>}, {transform_indices = @transform_2, window_bounds = array<i64: 1, 2, 128>}]} {
    %0 = tpu.iota {dimensions = array<i32: 1>} : vector<1x2x128xi32>
    %1 = arith.sitofp %0 : vector<1x2x128xi32> to vector<1x2x128xf32>
    %cst = arith.constant 4.000000e+00 : f32
    %2 = vector.broadcast %cst : f32 to vector<1x2x128xf32>
    %3 = arith.mulf %1, %2 : vector<1x2x128xf32>
    %c0 = arith.constant 0 : index
    %c0_0 = arith.constant 0 : index
    %c0_1 = arith.constant 0 : index
    %4 = vector.load %arg4[%c0, %c0_0, %c0_1] : memref<1x1x128xf32, #tpu.memory_space<vmem>>, vector<1x1x128xf32>
    %5 = vector.broadcast %4 : vector<1x1x128xf32> to vector<1x2x128xf32>
    %6 = arith.addf %3, %5 : vector<1x2x128xf32>
    %c8_i32 = arith.constant 8 : i32
    %7 = arith.muli %arg1, %c8_i32 : i32
    %8 = arith.index_cast %arg0 : i32 to index
    %c0_2 = arith.constant 0 : index
    %9 = memref.load %arg2[%8, %c0_2] : memref<2x2xi32, #tpu.memory_space<smem>>
    %10 = arith.index_cast %arg0 : i32 to index
    %c1 = arith.constant 1 : index
    %11 = memref.load %arg2[%10, %c1] : memref<2x2xi32, #tpu.memory_space<smem>>
    %12 = arith.subi %11, %7 : i32
    %13 = arith.sitofp %12 : i32 to f32
    %cst_3 = arith.constant 2.500000e-02 : f32
    %14 = arith.mulf %cst_3, %13 : f32
    %cst_4 = arith.constant 1.000000e+00 : f32
    %15 = arith.subf %cst_4, %14 : f32
    %16 = arith.subi %9, %7 : i32
    %17 = arith.sitofp %16 : i32 to f32
    %cst_5 = arith.constant 2.500000e-02 : f32
    %18 = arith.mulf %cst_5, %17 : f32
    %cst_6 = arith.constant 1.000000e+00 : f32
    %19 = arith.addf %cst_6, %18 : f32
    %cst_7 = arith.constant 2.500000e-02 : f32
    %20 = vector.broadcast %cst_7 : f32 to vector<1x2x128xf32>
    %21 = arith.mulf %6, %20 : vector<1x2x128xf32>
    %22 = vector.broadcast %13 : f32 to vector<1x2x128xf32>
    %23 = arith.cmpf olt, %6, %22 : vector<1x2x128xf32>
    %24 = vector.broadcast %15 : f32 to vector<1x2x128xf32>
    %25 = arith.addf %24, %21 : vector<1x2x128xf32>
    %26 = vector.broadcast %19 : f32 to vector<1x2x128xf32>
    %27 = arith.subf %26, %21 : vector<1x2x128xf32>
    %28 = arith.select %23, %25, %27 : vector<1x2x128xi1>, vector<1x2x128xf32>
    %c0_8 = arith.constant 0 : index
    %c0_9 = arith.constant 0 : index
    %c0_10 = arith.constant 0 : index
    %29 = vector.load %arg3[%c0_8, %c0_9, %c0_10] : memref<1x2x128xf32, #tpu.memory_space<vmem>>, vector<1x2x128xf32>
    %30 = arith.mulf %28, %29 : vector<1x2x128xf32>
    %c0_11 = arith.constant 0 : index
    %c0_12 = arith.constant 0 : index
    %c0_13 = arith.constant 0 : index
    %31 = vector.load %arg5[%c0_11, %c0_12, %c0_13] : memref<1x2x128xf32, #tpu.memory_space<vmem>>, vector<1x2x128xf32>
    tpu.vector_store %arg5[%c0_11, %c0_12, %c0_13], %30 {strides = array<i32>} : memref<1x2x128xf32, #tpu.memory_space<vmem>>, vector<1x2x128xf32>,
    return
  }
  func.func @transform_0(%arg0: i32, %arg1: i32, %arg2: memref<2x2xi32, #tpu.memory_space<smem>>) -> (i32, i32, i32) {
    %c0_i32 = arith.constant 0 : i32
    %c0_i32_0 = arith.constant 0 : i32
    return %arg0, %arg1, %c0_i32 : i32, i32, i32
  }
  func.func @transform_1(%arg0: i32, %arg1: i32, %arg2: memref<2x2xi32, #tpu.memory_space<smem>>) -> (i32, i32, i32) {
    %c0_i32 = arith.constant 0 : i32
    %c0_i32_0 = arith.constant 0 : i32
    %c0_i32_1 = arith.constant 0 : i32
    %c0_i32_2 = arith.constant 0 : i32
    return %c0_i32, %c0_i32_0, %c0_i32_1 : i32, i32, i32
  }
  func.func @transform_2(%arg0: i32, %arg1: i32, %arg2: memref<2x2xi32, #tpu.memory_space<smem>>) -> (i32, i32, i32) {
    %c0_i32 = arith.constant 0 : i32
    %c0_i32_0 = arith.constant 0 : i32
    return %arg0, %arg1, %c0_i32 : i32, i32, i32
  }
}

</mosaic_0001>

<llo_original>
// kernel: tpu_custom_call.1
$region0: #{tpu_custom_call.1}
  #allocation0 [shape = 'u32[]', space=smem, size = 0x4, offset = 0x4, fixed_abs, tag = 'smem constant byte address 0x4 - core index']
  #allocation1 [shape = 'u32[144,128]{1,0:T(1,128)}', space=vmem, size = 0x12000, scoped, tag = 'internal scratch']
  #allocation2 [shape = 's32[1]{0}', space=sflag, size = 0x4, scoped, tag = 'scoped memory for tpu_custom_call.1']
  #allocation3 [shape = 'u8[1024]{0}', space=smem, size = 0x400, scoped, tag = 'prefetched SMEM operand 0']
  %s0 = inlined_call_operand.hbm [shape: s32[2,2], index: 0, kind: input, shape index: {}]
  %s1 = inlined_call_operand.hbm [shape: f32[2,2,128], index: 1, kind: input, shape index: {}]
  %s2 = inlined_call_operand.vmem [shape: f32[1,1,128], index: 2, kind: input, shape index: {}]
  %s3 = inlined_call_operand.hbm [shape: f32[2,2,128], index: 3, kind: output, shape index: {}]
  %s4 = sld [smem:[#allocation0]]
  $region45: #{tpu_custom_call.1} parent=0
    _
  %s6 = ssub.s32 1, %s4
  %s7 = scalar_select 0, %s6, %s4
  %9 = dma.hbm_to_smem %s0, 32, [#allocation3], [#allocation2]
  %10 = dma.done [#allocation2], 32
  %11 = sfence
  $region1: #{tpu_custom_call.1} parent=0
    #allocation4 [shape = 'u8[2048]{0}', space=vmem, size = 0x800, scoped, tag = 'input window, operand 1']
    #allocation5 [shape = 's32[2]{0}', space=sflag, size = 0x8, scoped, tag = 'scoped memory for tpu_custom_call.1']
    #allocation6 [shape = 's32[2]{0}', space=sflag, size = 0x8, scoped, tag = 'scoped memory for tpu_custom_call.1']
    #allocation7 [shape = 'u8[2048]{0}', space=vmem, size = 0x800, scoped, tag = 'output window, operand 0']
    %12 = vsyncpa [#allocation5], 0
    %s13 = scalar_lea.sflag [#allocation5], 1
    %14 = vsyncpa %s13, 0
    %15 = vsyncpa [#allocation6], 0
    %s16 = scalar_lea.sflag [#allocation6], 1
    %17 = vsyncpa %s16, 0
    loop: start=0, step=1, limit=4
    $region2: #{tpu_custom_call.1} parent=1 // loop_pre_header
      _
    $region3: #{tpu_custom_call.1} parent=1 // loop_header
      %s19 = sphi 0, %s23
      %p20 = scmp.ge.s32.totalorder %s19, 4
      %s26 = sphi 0, %s38
      %s27 = sphi 0, %s34
      %s28 = sphi 0, %s26
      %s29 = sphi 0, %s27
      %s30 = sphi 0, %s28
      %s31 = sphi 0, %s29
      %s43 = sphi 0, %s45
      %s46 = sphi 0, %s43
      %s47 = sphi 0, %s46
      %s63 = sphi 0, %s47
      %s67 = sphi 0, %s67
      %s69 = sphi 0, %s67
      %s70 = sphi 0, %s69
      %s84 = sphi 0, %s70
      %s92 = sphi 0, %s94
      %s95 = sphi 0, %s92
      %s96 = sphi 0, %s95
      %s112 = sphi 0, %s96
    $region4: #{tpu_custom_call.1} parent=1 // loop_header_branch
      %22 = sbr.rel (%p20) target = $region8
    $region5: #{tpu_custom_call.1} parent=1 // loop_body
      %s24 = ssub.s32 %s19, 1
      %s25 = ssub.s32 %s19, 2
      %s32 = sadd.s32 1, %s27
      %p33 = scmp.ge.s32.totalorder %s32, 1
      %s34 = scalar_select %p33, 0, %s32
      %s35 = sadd.s32 1, %s26
      %s36 = scalar_select %p33, %s35, %s26
      %p37 = scmp.ge.s32.totalorder %s36, 2
      %s38 = scalar_select %p37, 0, %s36
      %s39 = ssub.s32 %s26, %s38
      %s40 = ssub.s32 %s27, %s34
      %s41 = sor.u32 %s39, %s40
      %p42 = scmp.eq.s32.totalorder %s41, 0
      %s44 = sadd.s32 %s43, 1
      %s45 = scalar_select %p42, %s43, %s44
      %p48 = pneg %p42
      %p49 = scmp.eq.s32.totalorder %s19, 1
      %p50 = por %p48, %p49
      %p51 = scmp.ne.s32.totalorder %s43, %s46
      %p52 = scmp.eq.s32.totalorder %s19, 0
      %p53 = por %p51, %p52
      %p54 = scmp.ne.s32.totalorder %s43, %s46
      %p55 = scmp.eq.s32.totalorder %s24, 1
      %p56 = por %p54, %p55
      %p57 = scmp.ne.s32.totalorder %s46, %s47
      %p58 = scmp.eq.s32.totalorder %s24, 0
      %p59 = por %p57, %p58
      %p60 = scmp.ne.s32.totalorder %s46, %s47
      %p61 = scmp.eq.s32.totalorder %s25, 1
      %p62 = por %p60, %p61
      %p64 = scmp.ne.s32.totalorder %s47, %s63
      %p65 = scmp.eq.s32.totalorder %s25, 0
      %p66 = por %p64, %p65
      %s68 = sadd.s32 %s67, 1
      %p71 = scmp.eq.s32.totalorder %s19, 1
      %p72 = scmp.ne.s32.totalorder %s67, %s69
      %p73 = scmp.eq.s32.totalorder %s19, 0
      %p74 = por %p72, %p73
      %p75 = scmp.ne.s32.totalorder %s67, %s69
      %p76 = scmp.eq.s32.totalorder %s24, 1
      %p77 = por %p75, %p76
      %p78 = scmp.ne.s32.totalorder %s69, %s70
      %p79 = scmp.eq.s32.totalorder %s24, 0
      %p80 = por %p78, %p79
      %p81 = scmp.ne.s32.totalorder %s69, %s70
      %p82 = scmp.eq.s32.totalorder %s25, 1
      %p83 = por %p81, %p82
      %p85 = scmp.ne.s32.totalorder %s70, %s84
      %p86 = scmp.eq.s32.totalorder %s25, 0
      %p87 = por %p85, %p86
      %s88 = ssub.s32 %s26, %s38
      %s89 = ssub.s32 %s27, %s34
      %s90 = sor.u32 %s88, %s89
      %p91 = scmp.eq.s32.totalorder %s90, 0
      %s93 = sadd.s32 %s92, 1
      %s94 = scalar_select %p91, %s92, %s93
      %p97 = pneg %p91
      %p98 = scmp.eq.s32.totalorder %s19, 1
      %p99 = por %p97, %p98
      %p100 = scmp.ne.s32.totalorder %s92, %s95
      %p101 = scmp.eq.s32.totalorder %s19, 0
      %p102 = por %p100, %p101
      %p103 = scmp.ne.s32.totalorder %s92, %s95
      %p104 = scmp.eq.s32.totalorder %s24, 1
      %p105 = por %p103, %p104
      %p106 = scmp.ne.s32.totalorder %s95, %s96
      %p107 = scmp.eq.s32.totalorder %s24, 0
      %p108 = por %p106, %p107
      %p109 = scmp.ne.s32.totalorder %s95, %s96
      %p110 = scmp.eq.s32.totalorder %s25, 1
      %p111 = por %p109, %p110
      %p113 = scmp.ne.s32.totalorder %s96, %s112
      %p114 = scmp.eq.s32.totalorder %s25, 0
      %p115 = por %p113, %p114
      %p116 = scmp.le.s32.totalorder 1, %s19
      %p117 = scmp.lt.s32.totalorder %s19, 3
      %p118 = pnand %p116, %p117
      %p119 = pneg %p118
      // Predicated region
      $region9: #{tpu_custom_call.1} parent=5 // pred_check
        _
      $region10: #{tpu_custom_call.1} parent=5 // pred_check_branch
        %121 = sbr.rel (%p118) target = $region12
      $region11: #{tpu_custom_call.1} parent=5 // pred_region
        %s122 = ssub.s32 %s19, 1
        // Predicated region
        $region13: #{tpu_custom_call.1} parent=11 // pred_check
          %p123 = pneg %p80
        $region14: #{tpu_custom_call.1} parent=11 // pred_check_branch
          %125 = sbr.rel (%p123) target = $region16
        $region15: #{tpu_custom_call.1} parent=11 // pred_region
          _
        $region16: #{tpu_custom_call.1} parent=11 // pred_fallthru
          _
      $region12: #{tpu_custom_call.1} parent=5 // pred_fallthru
        _
      %p126 = scmp.lt.s32.totalorder %s19, 2
      // Predicated region
      $region17: #{tpu_custom_call.1} parent=5 // pred_check
        %p127 = pneg %p126
      $region18: #{tpu_custom_call.1} parent=5 // pred_check_branch
        %129 = sbr.rel (%p127) target = $region20
      $region19: #{tpu_custom_call.1} parent=5 // pred_region
        // Predicated region
        $region21: #{tpu_custom_call.1} parent=19 // pred_check
          %p130 = pneg %p53
        $region22: #{tpu_custom_call.1} parent=19 // pred_check_branch
          %132 = sbr.rel (%p130) target = $region24
        $region23: #{tpu_custom_call.1} parent=19 // pred_region
          %s133 = sand.u32 %s43, 1
          %s134 = scalar_lea.sflag [#allocation5], %s133
          %s135 = sand.u32 %s43, 1
          %s136 = smul.addr %s135, 2
          %s137 = scalar_lea.vmem [#allocation4], %s136
          %s139 = ssub.s32 32, 32
          %140 = vsyncadd %s134, %s139
          %s141 = sadd.s32 %s27, %s26
          %s142 = smul.addr %s141, 32
          %s143 = scalar_lea.hbm %s1, %s142
          %s145 = sshll.u32 %s137, 4
          %s146 = int_to_ptr.vmem [resolvable:$true] %s145
          %148 = dma.hbm_to_vmem [thread:$0]  %s143, 32, %s146, %s134
        $region24: #{tpu_custom_call.1} parent=19 // pred_fallthru
          _
      $region20: #{tpu_custom_call.1} parent=5 // pred_fallthru
        _
      %p149 = scmp.le.s32.totalorder 1, %s19
      %p150 = scmp.lt.s32.totalorder %s19, 3
      %p151 = pnand %p149, %p150
      %p152 = pneg %p151
      // Predicated region
      $region25: #{tpu_custom_call.1} parent=5 // pred_check
        _
      $region26: #{tpu_custom_call.1} parent=5 // pred_check_branch
        %154 = sbr.rel (%p151) target = $region28
      $region27: #{tpu_custom_call.1} parent=5 // pred_region
        %s155 = ssub.s32 %s19, 1
        %s156 = sand.u32 %s46, 1
        %s157 = scalar_lea.sflag [#allocation5], %s156
        %s158 = sand.u32 %s46, 1
        %s159 = smul.addr %s158, 2
        %s160 = scalar_lea.vmem [#allocation4], %s159
        // Predicated region
        $region29: #{tpu_custom_call.1} parent=27 // pred_check
          %p161 = pneg %p59
        $region30: #{tpu_custom_call.1} parent=27 // pred_check_branch
          %163 = sbr.rel (%p161) target = $region32
        $region31: #{tpu_custom_call.1} parent=27 // pred_region
          %164 = dma.done %s157, 32
        $region32: #{tpu_custom_call.1} parent=27 // pred_fallthru
          _
        %s165 = sand.u32 %s46, 1
        %s166 = scalar_lea.sflag [#allocation5], %s165
        %s167 = sand.u32 %s46, 1
        %s168 = smul.addr %s167, 2
        %s169 = scalar_lea.vmem [#allocation4], %s168
        %p170 = pneg %p59
        %p171 = pneg %p56
        %p172 = pneg %p80
        %p173 = pneg %p77
        %p174 = pneg %p108
        %p175 = pneg %p105
        %s176 = sand.u32 %s95, 1
        %s177 = scalar_lea.sflag [#allocation6], %s176
        %s178 = sand.u32 %s95, 1
        %s179 = smul.addr %s178, 2
        %s180 = scalar_lea.vmem [#allocation7], %s179
        %v181 = vlaneseq
        %v182 = vshrl.u32 %v181, 7
        %v183 = vcvt.s32.f32 %v182
        %v184 = vmul.f32 %v183, 4.0
        %v185 = vld [vmem:[%s2] sm:$0x1]
        %v187 = vlaneseq
        %v188 = vshrl.u32 %v187, 7
        %v189 = vsub.s32 0, %v188
        %v190 = vrot.slane %v185, %v189
        %v192 = vadd.f32 %v184, %v190
        %s193 = smul.u32 %s29, 8
        %s194 = smul.u32 %s28, 128
        %s195 = sld [smem:[#allocation3 + %s194]]
        %s196 = sadd.s32 %s194, 1
        %s197 = sld [smem:[#allocation3 + %s196]]
        %s198 = ssub.s32 %s197, %s193
        %s199 = scvt.s32.f32 %s198
        %s200 = smul.f32 %s199, 0.025
        %s201 = ssub.f32 1.0, %s200
        %s202 = ssub.s32 %s195, %s193
        %s203 = scvt.s32.f32 %s202
        %s204 = smul.f32 %s203, 0.025
        %s205 = sadd.f32 %s204, 1.0
        %v206 = vmul.f32 %v192, 0.025
        %v207 = vstv %s199
        %vm208 = vcmp.lt.f32.partialorder %v192, %v207
        %v209 = vstv %s201
        %v210 = vadd.f32 %v209, %v206
        %v211 = vstv %s205
        %v212 = vsub.f32 %v211, %v206
        %v213 = vsel %vm208, %v210, %v212
        %v214 = vld [vmem:[%s160] sm:$0x3]
        %v215 = vmul.f32 %v213, %v214
        %216 = vst [vmem:[%s180] sm:$0x3] %v215
        %s217 = sand.u32 %s95, 1
        %s218 = scalar_lea.sflag [#allocation6], %s217
        %s219 = sand.u32 %s95, 1
        %s220 = smul.addr %s219, 2
        %s221 = scalar_lea.vmem [#allocation7], %s220
        // Predicated region
        $region33: #{tpu_custom_call.1} parent=27 // pred_check
          %p222 = pneg %p105
        $region34: #{tpu_custom_call.1} parent=27 // pred_check_branch
          %224 = sbr.rel (%p222) target = $region36
        $region35: #{tpu_custom_call.1} parent=27 // pred_region
          %s226 = ssub.s32 32, 32
          %227 = vsyncadd %s218, %s226
          %s228 = sadd.s32 %s29, %s28
          %s229 = smul.addr %s228, 32
          %s230 = scalar_lea.hbm %s3, %s229
          %s232 = sshll.u32 %s221, 4
          %s233 = int_to_ptr.vmem [resolvable:$true] %s232
          %235 = dma.vmem_to_hbm [thread:$0]  %s233, 32, %s230, %s218
        $region36: #{tpu_custom_call.1} parent=27 // pred_fallthru
          _
      $region28: #{tpu_custom_call.1} parent=5 // pred_fallthru
        _
      %p236 = scmp.le.s32.totalorder 2, %s19
      // Predicated region
      $region37: #{tpu_custom_call.1} parent=5 // pred_check
        %p237 = pneg %p236
      $region38: #{tpu_custom_call.1} parent=5 // pred_check_branch
        %239 = sbr.rel (%p237) target = $region40
      $region39: #{tpu_custom_call.1} parent=5 // pred_region
        %s240 = ssub.s32 %s19, 2
        // Predicated region
        $region41: #{tpu_custom_call.1} parent=39 // pred_check
          %p241 = pneg %p111
        $region42: #{tpu_custom_call.1} parent=39 // pred_check_branch
          %243 = sbr.rel (%p241) target = $region44
        $region43: #{tpu_custom_call.1} parent=39 // pred_region
          %s244 = sand.u32 %s96, 1
          %s245 = scalar_lea.sflag [#allocation6], %s244
          %s246 = sand.u32 %s96, 1
          %s247 = smul.addr %s246, 2
          %s248 = scalar_lea.vmem [#allocation7], %s247
          %249 = dma.done %s245, 32
        $region44: #{tpu_custom_call.1} parent=39 // pred_fallthru
          _
      $region40: #{tpu_custom_call.1} parent=5 // pred_fallthru
        _
    $region6: #{tpu_custom_call.1} parent=1 // loop_footer
      %s23 = sadd.s32 1, %s19
    $region7: #{tpu_custom_call.1} parent=1 // loop_footer_branch
      %18 = sbr.rel target = $region3
    $region8: #{tpu_custom_call.1} parent=1 // loop_exit
      _
    %250 = vsyncpa [#allocation5], 1
    %s251 = scalar_lea.sflag [#allocation5], 1
    %252 = vsyncpa %s251, 1
    %253 = vsyncpa [#allocation6], 1
    %s254 = scalar_lea.sflag [#allocation6], 1
    %255 = vsyncpa %s254, 1

</llo_original>
